<compile_context>
chip_gen: v6e
topology: v6e:2x2x1
jax: 0.10.0
libtpu: 0.0.40
codegen_flags: <defaults>
</compile_context>

<pallas_src>
import functools

import jax
import jax.numpy as jnp
from jax.experimental import pallas as pl
from jax.experimental.pallas import tpu as pltpu


MAX_TILE_M = 1024   # batch-tile cap (per-tile VMEM footprint stays a few MiB)


# ----------------------------------------------------------------------------
# Fused Pallas kernel: encoder -> (z_mean, z_log_var) -> sample -> decoder
# ----------------------------------------------------------------------------

def _vae_fused_kernel(*refs, n_enc, n_dec):
    """refs = [x, eps,
               (w, b) * n_enc,          # encoder hidden layers (padded to 128 lanes)
               wm, bm, wv, bv,          # z_mean / z_log_var heads (out = z_dim, unpadded)
               (w, b) * n_dec,          # decoder hidden layers (padded to 128 lanes)
               wr, br,                  # reconstruct_pixels   (out = x_dim, unpadded)
               recon_out, zmean_out, zlogvar_out]"""
    it = iter(refs)
    x_ref, eps_ref = next(it), next(it)
    enc = [(next(it), next(it)) for _ in range(n_enc)]
    wm_ref, bm_ref = next(it), next(it)
    wv_ref, bv_ref = next(it), next(it)
    dec = [(next(it), next(it)) for _ in range(n_dec)]
    wr_ref, br_ref = next(it), next(it)
    recon_ref, zmean_ref, zlogvar_ref = next(it), next(it), next(it)

    def linear(h, w_ref, b_ref):
        # bf16 operands, f32 accumulate; bias add stays in f32.
        return jnp.dot(h.astype(jnp.bfloat16), w_ref[...],
                       preferred_element_type=jnp.float32) + b_ref[...]

    # ---- encoder ----
    h = x_ref[...]
    for w_ref, b_ref in enc:
        h = jnp.maximum(linear(h, w_ref, b_ref), 0.0)

    # ---- z heads (exact z_dim width, no padding / slicing) ----
    z_mean = linear(h, wm_ref, bm_ref)
    z_log_var = linear(h, wv_ref, bv_ref)

    # ---- reparameterization: z = eps * exp(0.5*log_var) + mean ----
    z = eps_ref[...] * jnp.exp(0.5 * z_log_var) + z_mean

    # ---- decoder ----
    h = z
    for w_ref, b_ref in dec:
        h = jnp.maximum(linear(h, w_ref, b_ref), 0.0)
    recon = jax.nn.sigmoid(linear(h, wr_ref, br_ref))

    recon_ref[...] = recon
    zmean_ref[...] = z_mean
    zlogvar_ref[...] = z_log_var


# ----------------------------------------------------------------------------
# Parameter construction (deterministic, PyTorch-Linear-style init)
# ----------------------------------------------------------------------------

def _init_linear(key, fan_in, fan_out):
    """W ~ U(-k, k), b ~ U(-k, k), k = 1/sqrt(fan_in); W stored as (in, out)."""
    kw, kb = jax.random.split(key)
    k = 1.0 / jnp.sqrt(jnp.float32(fan_in))
    w = jax.random.uniform(kw, (fan_in, fan_out), jnp.float32, -k, k)
    b = jax.random.uniform(kb, (1, fan_out), jnp.float32, -k, k)
    return w, b


def make_vae_params(key, x_dim, h_dims, z_dim):
    keys = iter(jax.random.split(key, 16))
    params = {}
    enc_dims = [x_dim, *h_dims]
    params["encoder_hidden"] = [
        _init_linear(next(keys), f, t) for f, t in zip(enc_dims[:-1], enc_dims[1:])
    ]
    params["z_mean"] = _init_linear(next(keys), h_dims[-1], z_dim)
    params["z_log_var"] = _init_linear(next(keys), h_dims[-1], z_dim)
    dec_dims = [z_dim, *reversed(h_dims)]
    params["decoder_hidden"] = [
        _init_linear(next(keys), f, t) for f, t in zip(dec_dims[:-1], dec_dims[1:])
    ]
    params["reconstruct_pixels"] = _init_linear(next(keys), h_dims[0], x_dim)
    return params


# ----------------------------------------------------------------------------
# Padding / packing of parameters for the fused kernel
# ----------------------------------------------------------------------------

def _pad_to(n, m):
    return ((n + m - 1) // m) * m


def _pad2d(a, rows, cols):
    return jnp.pad(a, ((0, rows - a.shape[0]), (0, cols - a.shape[1])))


def prepare_fused_params(params, x_dim, h_dims, z_dim):
    """Zero-pad only the *internal* hidden dims to 128 lanes; cast weights to bf16.

    External dims (x_dim on input/output, z_dim on eps/z outputs) stay unpadded so the
    kernel reads/writes exact-width HBM blocks.  Zero padding of hidden lanes is
    numerically inert: padded weight rows/cols are zero and ReLU(0)=0.
    """
    h_pads = [_pad_to(h, 128) for h in h_dims]

    # Encoder hidden layers: (x_dim, h0_pad), (h0_pad, h1_pad), ...
    enc_in = [x_dim, *h_pads[:-1]]
    enc_out = h_pads
    enc = [(_pad2d(w, i, o).astype(jnp.bfloat16), _pad2d(b, 1, o))
           for (w, b), i, o in zip(params["encoder_hidden"], enc_in, enc_out)]

    # z heads: (h_last_pad, z_dim) each, output width left at z_dim.
    h_last = h_pads[-1]
    wm, bm = params["z_mean"]
    wv, bv = params["z_log_var"]
    wm = _pad2d(wm, h_last, z_dim).astype(jnp.bfloat16)
    wv = _pad2d(wv, h_last, z_dim).astype(jnp.bfloat16)

    # Decoder hidden layers: (z_dim, h[-1]_pad), (h[-1]_pad, h[-2]_pad), ...
    dec_dims = [z_dim, *reversed(h_pads)]
    dec = [(_pad2d(w, i, o).astype(jnp.bfloat16), _pad2d(b, 1, o))
           for (w, b), i, o in zip(params["decoder_hidden"], dec_dims[:-1], dec_dims[1:])]

    # reconstruct_pixels: (h0_pad, x_dim), output width left at x_dim.
    wr, br = params["reconstruct_pixels"]
    wr = _pad2d(wr, h_pads[0], x_dim).astype(jnp.bfloat16)

    return {"enc": enc, "wm": wm, "bm": bm, "wv": wv, "bv": bv,
            "dec": dec, "wr": wr, "br": br}


# ----------------------------------------------------------------------------
# Forward pass wrapper (single fused pallas_call)
# ----------------------------------------------------------------------------

def _pick_tiling(M):
    """Return (tile_m, m_pad). Guarantees >=2 tiles for non-trivial batches so
    v7x's second TensorCore is used; caps tile at MAX_TILE_M for big batches."""
    if M <= 16:                       # trivial batch: one small tile
        tile_m = _pad_to(M, 8)
        return tile_m, tile_m
    if M <= 2 * MAX_TILE_M:           # medium batch: exactly 2 tiles
        tile_m = _pad_to(pl.cdiv(M, 2), 8)
        return tile_m, 2 * tile_m
    tile_m = MAX_TILE_M               # large batch: pipeline over 1024-row tiles
    return tile_m, _pad_to(M, MAX_TILE_M)


def vae_forward_fused(fp, x, eps, *, x_dim, z_dim):
    n_enc = len(fp["enc"])
    n_dec = len(fp["dec"])

    h = x.reshape(-1, x_dim)                    # x.view(-1, x_dim)
    M = h.shape[0]
    tile_m, m_pad = _pick_tiling(M)

    # Only the batch dim is padded; feature dims stay at their true widths.
    xp = jnp.pad(h, ((0, m_pad - M), (0, 0))) if m_pad != M else h
    ep = jnp.pad(eps, ((0, m_pad - M), (0, 0))) if m_pad != M else eps

    weight_args = []
    for w, b in fp["enc"]:
        weight_args += [w, b]
    weight_args += [fp["wm"], fp["bm"], fp["wv"], fp["bv"]]
    for w, b in fp["dec"]:
        weight_args += [w, b]
    weight_args += [fp["wr"], fp["br"]]
    # Weights stay resident across batch tiles (same block every grid step).
    weight_specs = [pl.BlockSpec(a.shape, lambda i: (0, 0)) for a in weight_args]

    grid = (m_pad // tile_m,)
    recon, z_mean, z_log_var = pl.pallas_call(
        functools.partial(_vae_fused_kernel, n_enc=n_enc, n_dec=n_dec),
        out_shape=(
            jax.ShapeDtypeStruct((m_pad, x_dim), jnp.float32),
            jax.ShapeDtypeStruct((m_pad, z_dim), jnp.float32),
            jax.ShapeDtypeStruct((m_pad, z_dim), jnp.float32),
        ),
        grid=grid,
        in_specs=[
            pl.BlockSpec((tile_m, x_dim), lambda i: (i, 0)),   # x   (unpadded feature dim)
            pl.BlockSpec((tile_m, z_dim), lambda i: (i, 0)),   # eps (unpadded z dim)
        ] + weight_specs,
        out_specs=(
            pl.BlockSpec((tile_m, x_dim), lambda i: (i, 0)),
            pl.BlockSpec((tile_m, z_dim), lambda i: (i, 0)),
            pl.BlockSpec((tile_m, z_dim), lambda i: (i, 0)),
        ),
        compiler_params=pltpu.CompilerParams(
            dimension_semantics=("parallel",),
            vmem_limit_bytes=32 * 1024 * 1024,   # explicit: safe for v5e's smaller default
        ),
    )(xp, ep, *weight_args)

    # Strip batch padding back to the module's logical shapes.
    return recon[:M], z_mean[:M], z_log_var[:M]


# ----------------------------------------------------------------------------
# Pure-JAX reference (matches the PyTorch module) for a correctness check
# ----------------------------------------------------------------------------

def vae_forward_ref(params, x, eps, x_dim):
    hp = jax.lax.Precision.HIGHEST
    h = x.reshape(-1, x_dim)
    for w, b in params["encoder_hidden"]:
        h = jax.nn.relu(jnp.dot(h, w, precision=hp) + b)
    z_mean = jnp.dot(h, params["z_mean"][0], precision=hp) + params["z_mean"][1]
    z_log_var = jnp.dot(h, params["z_log_var"][0], precision=hp) + params["z_log_var"][1]
    z = eps * jnp.exp(0.5 * z_log_var) + z_mean
    h = z
    for w, b in params["decoder_hidden"]:
        h = jax.nn.relu(jnp.dot(h, w, precision=hp) + b)
    recon = jax.nn.sigmoid(
        jnp.dot(h, params["reconstruct_pixels"][0], precision=hp)
        + params["reconstruct_pixels"][1])
    return recon, z_mean, z_log_var


# ----------------------------------------------------------------------------
# Demo
# ----------------------------------------------------------------------------

if __name__ == "__main__":
    x_dim = 64                 # flattened 1x8x8 "image"
    h_dims = [48, 32]
    z_dim = 16
    batch = 4

    root = jax.random.PRNGKey(0)
    k_params, k_x, k_eps, k_x2, k_eps2 = jax.random.split(root, 5)

    params = make_vae_params(k_params, x_dim, h_dims, z_dim)
    fused = prepare_fused_params(params, x_dim, h_dims, z_dim)

    fwd = jax.jit(functools.partial(vae_forward_fused, x_dim=x_dim, z_dim=z_dim))

    # ---- small batch (single tile path) ----
    x = jax.random.normal(k_x, (batch, 1, 8, 8), dtype=jnp.float32)     # NCHW-style input
    # torch.randn_like(std) equivalent, drawn outside the kernel and passed in.
    eps = jax.random.normal(k_eps, (batch, z_dim), dtype=jnp.float32)

    recon, z_mean, z_log_var = fwd(fused, x, eps)
    jax.block_until_ready((recon, z_mean, z_log_var))

    assert recon.shape == (batch, x_dim)
    assert z_mean.shape == (batch, z_dim)
    assert z_log_var.shape == (batch, z_dim)
    assert bool(jnp.all((recon >= 0.0) & (recon <= 1.0)))

    r_ref, m_ref, v_ref = vae_forward_ref(params, x, eps, x_dim)
    assert float(jnp.max(jnp.abs(recon - r_ref))) < 5e-2
    assert float(jnp.max(jnp.abs(z_mean - m_ref))) < 5e-2
    assert float(jnp.max(jnp.abs(z_log_var - v_ref))) < 5e-2

    # ---- medium batch (two-tile / megacore path) ----
    batch2 = 200
    x2 = jax.random.normal(k_x2, (batch2, x_dim), dtype=jnp.float32)
    eps2 = jax.random.normal(k_eps2, (batch2, z_dim), dtype=jnp.float32)
    recon2, m2, v2 = fwd(fused, x2, eps2)
    jax.block_until_ready((recon2, m2, v2))

    assert recon2.shape == (batch2, x_dim)
    r2_ref, m2_ref, v2_ref = vae_forward_ref(params, x2, eps2, x_dim)
    assert float(jnp.max(jnp.abs(recon2 - r2_ref))) < 5e-2
    assert float(jnp.max(jnp.abs(m2 - m2_ref))) < 5e-2
    assert float(jnp.max(jnp.abs(v2 - v2_ref))) < 5e-2

    print("KERNEL_OK")
</pallas_src>

<mosaic_0001>
module attributes {stable_mosaic.version = 11 : i64} {
  func.func @_vae_fused_kernel(%arg0: i32, %arg1: memref<8x64xf32, #tpu.memory_space<vmem>>, %arg2: memref<8x16xf32, #tpu.memory_space<vmem>>, %arg3: memref<64x128xbf16, #tpu.memory_space<vmem>>, %arg4: memref<1x128xf32, #tpu.memory_space<vmem>>, %arg5: memref<128x128xbf16, #tpu.memory_space<vmem>>, %arg6: memref<1x128xf32, #tpu.memory_space<vmem>>, %arg7: memref<128x16xbf16, #tpu.memory_space<vmem>>, %arg8: memref<1x16xf32, #tpu.memory_space<vmem>>, %arg9: memref<128x16xbf16, #tpu.memory_space<vmem>>, %arg10: memref<1x16xf32, #tpu.memory_space<vmem>>, %arg11: memref<16x128xbf16, #tpu.memory_space<vmem>>, %arg12: memref<1x128xf32, #tpu.memory_space<vmem>>, %arg13: memref<128x128xbf16, #tpu.memory_space<vmem>>, %arg14: memref<1x128xf32, #tpu.memory_space<vmem>>, %arg15: memref<128x64xbf16, #tpu.memory_space<vmem>>, %arg16: memref<1x64xf32, #tpu.memory_space<vmem>>, %arg17: memref<8x64xf32, #tpu.memory_space<vmem>>, %arg18: memref<8x16xf32, #tpu.memory_space<vmem>>, %arg19: memref<8x16xf32, #tpu.memory_space<vmem>>) attributes {dimension_semantics = [#tpu.dimension_semantics<parallel>], iteration_bounds = array<i64: 1>, scalar_prefetch = 0 : i64, scratch_operands = 0 : i64, tpu.core_type = #tpu.core_type<tc>, window_params = [{transform_indices = @transform_0, window_bounds = array<i64: 8, 64>}, {transform_indices = @transform_1, window_bounds = array<i64: 8, 16>}, {pipeline_mode = #tpu.pipeline_mode<synchronous>, transform_indices = @transform_2, window_bounds = array<i64: 64, 128>}, {pipeline_mode = #tpu.pipeline_mode<synchronous>, transform_indices = @transform_3, window_bounds = array<i64: 1, 128>}, {pipeline_mode = #tpu.pipeline_mode<synchronous>, transform_indices = @transform_4, window_bounds = array<i64: 128, 128>}, {pipeline_mode = #tpu.pipeline_mode<synchronous>, transform_indices = @transform_5, window_bounds = array<i64: 1, 128>}, {pipeline_mode = #tpu.pipeline_mode<synchronous>, transform_indices = @transform_6, window_bounds = array<i64: 128, 16>}, {pipeline_mode = #tpu.pipeline_mode<synchronous>, transform_indices = @transform_7, window_bounds = array<i64: 1, 16>}, {pipeline_mode = #tpu.pipeline_mode<synchronous>, transform_indices = @transform_8, window_bounds = array<i64: 128, 16>}, {pipeline_mode = #tpu.pipeline_mode<synchronous>, transform_indices = @transform_9, window_bounds = array<i64: 1, 16>}, {pipeline_mode = #tpu.pipeline_mode<synchronous>, transform_indices = @transform_10, window_bounds = array<i64: 16, 128>}, {pipeline_mode = #tpu.pipeline_mode<synchronous>, transform_indices = @transform_11, window_bounds = array<i64: 1, 128>}, {pipeline_mode = #tpu.pipeline_mode<synchronous>, transform_indices = @transform_12, window_bounds = array<i64: 128, 128>}, {pipeline_mode = #tpu.pipeline_mode<synchronous>, transform_indices = @transform_13, window_bounds = array<i64: 1, 128>}, {pipeline_mode = #tpu.pipeline_mode<synchronous>, transform_indices = @transform_14, window_bounds = array<i64: 128, 64>}, {pipeline_mode = #tpu.pipeline_mode<synchronous>, transform_indices = @transform_15, window_bounds = array<i64: 1, 64>}, {transform_indices = @transform_16, window_bounds = array<i64: 8, 64>}, {transform_indices = @transform_17, window_bounds = array<i64: 8, 16>}, {transform_indices = @transform_18, window_bounds = array<i64: 8, 16>}]} {
    %c0 = arith.constant 0 : index
    %c0_0 = arith.constant 0 : index
    %0 = vector.load %arg1[%c0, %c0_0] : memref<8x64xf32, #tpu.memory_space<vmem>>, vector<8x64xf32>
    %1 = arith.truncf %0 : vector<8x64xf32> to vector<8x64xbf16>
    %c0_1 = arith.constant 0 : index
    %c0_2 = arith.constant 0 : index
    %2 = vector.load %arg3[%c0_1, %c0_2] : memref<64x128xbf16, #tpu.memory_space<vmem>>, vector<64x128xbf16>
    %cst = arith.constant dense<0.000000e+00> : vector<8x128xf32>
    %3 = tpu.matmul %1, %2, %cst {dimension_numbers = #tpu.dot_dimension_numbers<[1], [0], [0], [1], [0, 0, 1, 1], [], []>} : vector<8x64xbf16>, vector<64x128xbf16>, vector<8x128xf32> -> vector<8x128xf32>
    %c0_3 = arith.constant 0 : index
    %c0_4 = arith.constant 0 : index
    %4 = vector.load %arg4[%c0_3, %c0_4] : memref<1x128xf32, #tpu.memory_space<vmem>>, vector<1x128xf32>
    %5 = vector.broadcast %4 : vector<1x128xf32> to vector<8x128xf32>
    %6 = arith.addf %3, %5 : vector<8x128xf32>
    %cst_5 = arith.constant 0.000000e+00 : f32
    %7 = vector.broadcast %cst_5 : f32 to vector<8x128xf32>
    %8 = arith.maximumf %6, %7 : vector<8x128xf32>
    %9 = arith.truncf %8 : vector<8x128xf32> to vector<8x128xbf16>
    %c0_6 = arith.constant 0 : index
    %c0_7 = arith.constant 0 : index
    %10 = vector.load %arg5[%c0_6, %c0_7] : memref<128x128xbf16, #tpu.memory_space<vmem>>, vector<128x128xbf16>
    %cst_8 = arith.constant dense<0.000000e+00> : vector<8x128xf32>
    %11 = tpu.matmul %9, %10, %cst_8 {dimension_numbers = #tpu.dot_dimension_numbers<[1], [0], [0], [1], [0, 0, 1, 1], [], []>} : vector<8x128xbf16>, vector<128x128xbf16>, vector<8x128xf32> -> vector<8x128xf32>
    %c0_9 = arith.constant 0 : index
    %c0_10 = arith.constant 0 : index
    %12 = vector.load %arg6[%c0_9, %c0_10] : memref<1x128xf32, #tpu.memory_space<vmem>>, vector<1x128xf32>
    %13 = vector.broadcast %12 : vector<1x128xf32> to vector<8x128xf32>
    %14 = arith.addf %11, %13 : vector<8x128xf32>
    %cst_11 = arith.constant 0.000000e+00 : f32
    %15 = vector.broadcast %cst_11 : f32 to vector<8x128xf32>
    %16 = arith.maximumf %14, %15 : vector<8x128xf32>
    %17 = arith.truncf %16 : vector<8x128xf32> to vector<8x128xbf16>
    %c0_12 = arith.constant 0 : index
    %c0_13 = arith.constant 0 : index
    %18 = vector.load %arg7[%c0_12, %c0_13] : memref<128x16xbf16, #tpu.memory_space<vmem>>, vector<128x16xbf16>
    %cst_14 = arith.constant dense<0.000000e+00> : vector<8x16xf32>
    %19 = tpu.matmul %17, %18, %cst_14 {dimension_numbers = #tpu.dot_dimension_numbers<[1], [0], [0], [1], [0, 0, 1, 1], [], []>} : vector<8x128xbf16>, vector<128x16xbf16>, vector<8x16xf32> -> vector<8x16xf32>
    %c0_15 = arith.constant 0 : index
    %c0_16 = arith.constant 0 : index
    %20 = vector.load %arg8[%c0_15, %c0_16] : memref<1x16xf32, #tpu.memory_space<vmem>>, vector<1x16xf32>
    %21 = vector.broadcast %20 : vector<1x16xf32> to vector<8x16xf32>
    %22 = arith.addf %19, %21 : vector<8x16xf32>
    %23 = arith.truncf %16 : vector<8x128xf32> to vector<8x128xbf16>
    %c0_17 = arith.constant 0 : index
    %c0_18 = arith.constant 0 : index
    %24 = vector.load %arg9[%c0_17, %c0_18] : memref<128x16xbf16, #tpu.memory_space<vmem>>, vector<128x16xbf16>
    %cst_19 = arith.constant dense<0.000000e+00> : vector<8x16xf32>
    %25 = tpu.matmul %23, %24, %cst_19 {dimension_numbers = #tpu.dot_dimension_numbers<[1], [0], [0], [1], [0, 0, 1, 1], [], []>} : vector<8x128xbf16>, vector<128x16xbf16>, vector<8x16xf32> -> vector<8x16xf32>
    %c0_20 = arith.constant 0 : index
    %c0_21 = arith.constant 0 : index
    %26 = vector.load %arg10[%c0_20, %c0_21] : memref<1x16xf32, #tpu.memory_space<vmem>>, vector<1x16xf32>
    %27 = vector.broadcast %26 : vector<1x16xf32> to vector<8x16xf32>
    %28 = arith.addf %25, %27 : vector<8x16xf32>
    %c0_22 = arith.constant 0 : index
    %c0_23 = arith.constant 0 : index
    %29 = vector.load %arg2[%c0_22, %c0_23] : memref<8x16xf32, #tpu.memory_space<vmem>>, vector<8x16xf32>
    %cst_24 = arith.constant 5.000000e-01 : f32
    %30 = vector.broadcast %cst_24 : f32 to vector<8x16xf32>
    %31 = arith.mulf %30, %28 : vector<8x16xf32>
    %32 = math.exp %31 : vector<8x16xf32>
    %33 = arith.mulf %29, %32 : vector<8x16xf32>
    %34 = arith.addf %33, %22 : vector<8x16xf32>
    %35 = arith.truncf %34 : vector<8x16xf32> to vector<8x16xbf16>
    %c0_25 = arith.constant 0 : index
    %c0_26 = arith.constant 0 : index
    %36 = vector.load %arg11[%c0_25, %c0_26] : memref<16x128xbf16, #tpu.memory_space<vmem>>, vector<16x128xbf16>
    %cst_27 = arith.constant dense<0.000000e+00> : vector<8x128xf32>
    %37 = tpu.matmul %35, %36, %cst_27 {dimension_numbers = #tpu.dot_dimension_numbers<[1], [0], [0], [1], [0, 0, 1, 1], [], []>} : vector<8x16xbf16>, vector<16x128xbf16>, vector<8x128xf32> -> vector<8x128xf32>
    %c0_28 = arith.constant 0 : index
    %c0_29 = arith.constant 0 : index
    %38 = vector.load %arg12[%c0_28, %c0_29] : memref<1x128xf32, #tpu.memory_space<vmem>>, vector<1x128xf32>
    %39 = vector.broadcast %38 : vector<1x128xf32> to vector<8x128xf32>
    %40 = arith.addf %37, %39 : vector<8x128xf32>
    %cst_30 = arith.constant 0.000000e+00 : f32
    %41 = vector.broadcast %cst_30 : f32 to vector<8x128xf32>
    %42 = arith.maximumf %40, %41 : vector<8x128xf32>
    %43 = arith.truncf %42 : vector<8x128xf32> to vector<8x128xbf16>
    %c0_31 = arith.constant 0 : index
    %c0_32 = arith.constant 0 : index
    %44 = vector.load %arg13[%c0_31, %c0_32] : memref<128x128xbf16, #tpu.memory_space<vmem>>, vector<128x128xbf16>
    %cst_33 = arith.constant dense<0.000000e+00> : vector<8x128xf32>
    %45 = tpu.matmul %43, %44, %cst_33 {dimension_numbers = #tpu.dot_dimension_numbers<[1], [0], [0], [1], [0, 0, 1, 1], [], []>} : vector<8x128xbf16>, vector<128x128xbf16>, vector<8x128xf32> -> vector<8x128xf32>
    %c0_34 = arith.constant 0 : index
    %c0_35 = arith.constant 0 : index
    %46 = vector.load %arg14[%c0_34, %c0_35] : memref<1x128xf32, #tpu.memory_space<vmem>>, vector<1x128xf32>
    %47 = vector.broadcast %46 : vector<1x128xf32> to vector<8x128xf32>
    %48 = arith.addf %45, %47 : vector<8x128xf32>
    %cst_36 = arith.constant 0.000000e+00 : f32
    %49 = vector.broadcast %cst_36 : f32 to vector<8x128xf32>
    %50 = arith.maximumf %48, %49 : vector<8x128xf32>
    %51 = arith.truncf %50 : vector<8x128xf32> to vector<8x128xbf16>
    %c0_37 = arith.constant 0 : index
    %c0_38 = arith.constant 0 : index
    %52 = vector.load %arg15[%c0_37, %c0_38] : memref<128x64xbf16, #tpu.memory_space<vmem>>, vector<128x64xbf16>
    %cst_39 = arith.constant dense<0.000000e+00> : vector<8x64xf32>
    %53 = tpu.matmul %51, %52, %cst_39 {dimension_numbers = #tpu.dot_dimension_numbers<[1], [0], [0], [1], [0, 0, 1, 1], [], []>} : vector<8x128xbf16>, vector<128x64xbf16>, vector<8x64xf32> -> vector<8x64xf32>
    %c0_40 = arith.constant 0 : index
    %c0_41 = arith.constant 0 : index
    %54 = vector.load %arg16[%c0_40, %c0_41] : memref<1x64xf32, #tpu.memory_space<vmem>>, vector<1x64xf32>
    %55 = vector.broadcast %54 : vector<1x64xf32> to vector<8x64xf32>
    %56 = arith.addf %53, %55 : vector<8x64xf32>
    %57 = arith.negf %56 : vector<8x64xf32>
    %58 = math.exp %57 : vector<8x64xf32>
    %cst_42 = arith.constant 1.000000e+00 : f32
    %59 = vector.broadcast %cst_42 : f32 to vector<8x64xf32>
    %60 = arith.addf %59, %58 : vector<8x64xf32>
    %61 = arith.divf %59, %60 : vector<8x64xf32>
    %c0_43 = arith.constant 0 : index
    %c0_44 = arith.constant 0 : index
    %62 = vector.load %arg17[%c0_43, %c0_44] : memref<8x64xf32, #tpu.memory_space<vmem>>, vector<8x64xf32>
    tpu.vector_store %arg17[%c0_43, %c0_44], %61 {strides = array<i32>} : memref<8x64xf32, #tpu.memory_space<vmem>>, vector<8x64xf32>,
    %c0_45 = arith.constant 0 : index
    %c0_46 = arith.constant 0 : index
    %63 = vector.load %arg18[%c0_45, %c0_46] : memref<8x16xf32, #tpu.memory_space<vmem>>, vector<8x16xf32>
    tpu.vector_store %arg18[%c0_45, %c0_46], %22 {strides = array<i32>} : memref<8x16xf32, #tpu.memory_space<vmem>>, vector<8x16xf32>,
    %c0_47 = arith.constant 0 : index
    %c0_48 = arith.constant 0 : index
    %64 = vector.load %arg19[%c0_47, %c0_48] : memref<8x16xf32, #tpu.memory_space<vmem>>, vector<8x16xf32>
    tpu.vector_store %arg19[%c0_47, %c0_48], %28 {strides = array<i32>} : memref<8x16xf32, #tpu.memory_space<vmem>>, vector<8x16xf32>,
    return
  }
  func.func @transform_0(%arg0: i32) -> (i32, i32) {
    %c0_i32 = arith.constant 0 : i32
    %c0_i32_0 = arith.constant 0 : i32
    return %arg0, %c0_i32 : i32, i32
  }
  func.func @transform_1(%arg0: i32) -> (i32, i32) {
    %c0_i32 = arith.constant 0 : i32
    %c0_i32_0 = arith.constant 0 : i32
    return %arg0, %c0_i32 : i32, i32
  }
  func.func @transform_2(%arg0: i32) -> (i32, i32) {
    %c0_i32 = arith.constant 0 : i32
    %c0_i32_0 = arith.constant 0 : i32
    %c0_i32_1 = arith.constant 0 : i32
    return %c0_i32, %c0_i32_0 : i32, i32
  }
  func.func @transform_3(%arg0: i32) -> (i32, i32) {
    %c0_i32 = arith.constant 0 : i32
    %c0_i32_0 = arith.constant 0 : i32
    %c0_i32_1 = arith.constant 0 : i32
    return %c0_i32, %c0_i32_0 : i32, i32
  }
  func.func @transform_4(%arg0: i32) -> (i32, i32) {
    %c0_i32 = arith.constant 0 : i32
    %c0_i32_0 = arith.constant 0 : i32
    %c0_i32_1 = arith.constant 0 : i32
    return %c0_i32, %c0_i32_0 : i32, i32
  }
  func.func @transform_5(%arg0: i32) -> (i32, i32) {
    %c0_i32 = arith.constant 0 : i32
    %c0_i32_0 = arith.constant 0 : i32
    %c0_i32_1 = arith.constant 0 : i32
    return %c0_i32, %c0_i32_0 : i32, i32
  }
  func.func @transform_6(%arg0: i32) -> (i32, i32) {
    %c0_i32 = arith.constant 0 : i32
    %c0_i32_0 = arith.constant 0 : i32
    %c0_i32_1 = arith.constant 0 : i32
    return %c0_i32, %c0_i32_0 : i32, i32
  }
  func.func @transform_7(%arg0: i32) -> (i32, i32) {
    %c0_i32 = arith.constant 0 : i32
    %c0_i32_0 = arith.constant 0 : i32
    %c0_i32_1 = arith.constant 0 : i32
    return %c0_i32, %c0_i32_0 : i32, i32
  }
  func.func @transform_8(%arg0: i32) -> (i32, i32) {
    %c0_i32 = arith.constant 0 : i32
    %c0_i32_0 = arith.constant 0 : i32
    %c0_i32_1 = arith.constant 0 : i32
    return %c0_i32, %c0_i32_0 : i32, i32
  }
  func.func @transform_9(%arg0: i32) -> (i32, i32) {
    %c0_i32 = arith.constant 0 : i32
    %c0_i32_0 = arith.constant 0 : i32
    %c0_i32_1 = arith.constant 0 : i32
    return %c0_i32, %c0_i32_0 : i32, i32
  }
  func.func @transform_10(%arg0: i32) -> (i32, i32) {
    %c0_i32 = arith.constant 0 : i32
    %c0_i32_0 = arith.constant 0 : i32
    %c0_i32_1 = arith.constant 0 : i32
    return %c0_i32, %c0_i32_0 : i32, i32
  }
  func.func @transform_11(%arg0: i32) -> (i32, i32) {
    %c0_i32 = arith.constant 0 : i32
    %c0_i32_0 = arith.constant 0 : i32
    %c0_i32_1 = arith.constant 0 : i32
    return %c0_i32, %c0_i32_0 : i32, i32
  }
  func.func @transform_12(%arg0: i32) -> (i32, i32) {
    %c0_i32 = arith.constant 0 : i32
    %c0_i32_0 = arith.constant 0 : i32
    %c0_i32_1 = arith.constant 0 : i32
    return %c0_i32, %c0_i32_0 : i32, i32
  }
  func.func @transform_13(%arg0: i32) -> (i32, i32) {
    %c0_i32 = arith.constant 0 : i32
    %c0_i32_0 = arith.constant 0 : i32
    %c0_i32_1 = arith.constant 0 : i32
    return %c0_i32, %c0_i32_0 : i32, i32
  }
  func.func @transform_14(%arg0: i32) -> (i32, i32) {
    %c0_i32 = arith.constant 0 : i32
    %c0_i32_0 = arith.constant 0 : i32
    %c0_i32_1 = arith.constant 0 : i32
    return %c0_i32, %c0_i32_0 : i32, i32
  }
  func.func @transform_15(%arg0: i32) -> (i32, i32) {
    %c0_i32 = arith.constant 0 : i32
    %c0_i32_0 = arith.constant 0 : i32
    %c0_i32_1 = arith.constant 0 : i32
    return %c0_i32, %c0_i32_0 : i32, i32
  }
  func.func @transform_16(%arg0: i32) -> (i32, i32) {
    %c0_i32 = arith.constant 0 : i32
    %c0_i32_0 = arith.constant 0 : i32
    return %arg0, %c0_i32 : i32, i32
  }
  func.func @transform_17(%arg0: i32) -> (i32, i32) {
    %c0_i32 = arith.constant 0 : i32
    %c0_i32_0 = arith.constant 0 : i32
    return %arg0, %c0_i32 : i32, i32
  }
  func.func @transform_18(%arg0: i32) -> (i32, i32) {
    %c0_i32 = arith.constant 0 : i32
    %c0_i32_0 = arith.constant 0 : i32
    return %arg0, %c0_i32 : i32, i32
  }
}

</mosaic_0001>

<llo_original>
// kernel: vae_forward_fused.1
$region0: #{vae_forward_fused.1}
  #allocation0 [shape = 'u32[]', space=smem, size = 0x4, offset = 0x4, fixed_abs, tag = 'smem constant byte address 0x4 - core index']
  #allocation1 [shape = 'u32[144,128]{1,0:T(1,128)}', space=vmem, size = 0x12000, scoped, tag = 'internal scratch']
  %s0 = inlined_call_operand.vmem [shape: f32[8,64], index: 0, kind: input, shape index: {}]
  %s1 = inlined_call_operand.vmem [shape: f32[8,16], index: 1, kind: input, shape index: {}]
  %s2 = inlined_call_operand.vmem [shape: bf16[64,128], index: 2, kind: input, shape index: {}]
  %s3 = inlined_call_operand.vmem [shape: f32[1,128], index: 3, kind: input, shape index: {}]
  %s4 = inlined_call_operand.vmem [shape: bf16[128,128], index: 4, kind: input, shape index: {}]
  %s5 = inlined_call_operand.vmem [shape: f32[1,128], index: 5, kind: input, shape index: {}]
  %s6 = inlined_call_operand.vmem [shape: bf16[128,16], index: 6, kind: input, shape index: {}]
  %s7 = inlined_call_operand.vmem [shape: f32[1,16], index: 7, kind: input, shape index: {}]
  %s8 = inlined_call_operand.vmem [shape: bf16[128,16], index: 8, kind: input, shape index: {}]
  %s9 = inlined_call_operand.vmem [shape: f32[1,16], index: 9, kind: input, shape index: {}]
  %s10 = inlined_call_operand.vmem [shape: bf16[16,128], index: 10, kind: input, shape index: {}]
  %s11 = inlined_call_operand.vmem [shape: f32[1,128], index: 11, kind: input, shape index: {}]
  %s12 = inlined_call_operand.vmem [shape: bf16[128,128], index: 12, kind: input, shape index: {}]
  %s13 = inlined_call_operand.vmem [shape: f32[1,128], index: 13, kind: input, shape index: {}]
  %s14 = inlined_call_operand.vmem [shape: bf16[128,64], index: 14, kind: input, shape index: {}]
  %s15 = inlined_call_operand.vmem [shape: f32[1,64], index: 15, kind: input, shape index: {}]
  %s16 = inlined_call_operand.vmem [shape: f32[8,64], index: 16, kind: output, shape index: {0}]
  %s17 = inlined_call_operand.vmem [shape: f32[8,16], index: 17, kind: output, shape index: {1}]
  %s18 = inlined_call_operand.vmem [shape: f32[8,16], index: 18, kind: output, shape index: {2}]
  %19 = xla_tuple %s16, %s17, %s18
  %s20 = sld [smem:[#allocation0]]
  $region90: #{vae_forward_fused.1} parent=0
    _
  %s22 = ssub.s32 1, %s20
  %s23 = scalar_select 0, %s22, %s20
  // Predicated region
  $region2: #{vae_forward_fused.1} parent=0 // pred_check
    _
  $region3: #{vae_forward_fused.1} parent=0 // pred_check_branch
    %25 = sbr.rel (0) target = $region5
  $region4: #{vae_forward_fused.1} parent=0 // pred_region
    _
  $region5: #{vae_forward_fused.1} parent=0 // pred_fallthru
    _
  // Predicated region
  $region6: #{vae_forward_fused.1} parent=0 // pred_check
    _
  $region7: #{vae_forward_fused.1} parent=0 // pred_check_branch
    %27 = sbr.rel (0) target = $region9
  $region8: #{vae_forward_fused.1} parent=0 // pred_region
    _
  $region9: #{vae_forward_fused.1} parent=0 // pred_fallthru
    _
  // Predicated region
  $region10: #{vae_forward_fused.1} parent=0 // pred_check
    _
  $region11: #{vae_forward_fused.1} parent=0 // pred_check_branch
    %29 = sbr.rel (0) target = $region13
  $region12: #{vae_forward_fused.1} parent=0 // pred_region
    _
  $region13: #{vae_forward_fused.1} parent=0 // pred_fallthru
    _
  // Predicated region
  $region14: #{vae_forward_fused.1} parent=0 // pred_check
    _
  $region15: #{vae_forward_fused.1} parent=0 // pred_check_branch
    %31 = sbr.rel (0) target = $region17
  $region16: #{vae_forward_fused.1} parent=0 // pred_region
    _
  $region17: #{vae_forward_fused.1} parent=0 // pred_fallthru
    _
  // Predicated region
  $region18: #{vae_forward_fused.1} parent=0 // pred_check
    _
  $region19: #{vae_forward_fused.1} parent=0 // pred_check_branch
    %33 = sbr.rel (0) target = $region21
  $region20: #{vae_forward_fused.1} parent=0 // pred_region
    _
  $region21: #{vae_forward_fused.1} parent=0 // pred_fallthru
    _
  // Predicated region
  $region22: #{vae_forward_fused.1} parent=0 // pred_check
    _
  $region23: #{vae_forward_fused.1} parent=0 // pred_check_branch
    %35 = sbr.rel (0) target = $region25
  $region24: #{vae_forward_fused.1} parent=0 // pred_region
    _
  $region25: #{vae_forward_fused.1} parent=0 // pred_fallthru
    _
  // Predicated region
  $region26: #{vae_forward_fused.1} parent=0 // pred_check
    _
  $region27: #{vae_forward_fused.1} parent=0 // pred_check_branch
    %37 = sbr.rel (0) target = $region29
  $region28: #{vae_forward_fused.1} parent=0 // pred_region
    _
  $region29: #{vae_forward_fused.1} parent=0 // pred_fallthru
    _
  // Predicated region
  $region30: #{vae_forward_fused.1} parent=0 // pred_check
    _
  $region31: #{vae_forward_fused.1} parent=0 // pred_check_branch
    %39 = sbr.rel (0) target = $region33
  $region32: #{vae_forward_fused.1} parent=0 // pred_region
    _
  $region33: #{vae_forward_fused.1} parent=0 // pred_fallthru
    _
  // Predicated region
  $region34: #{vae_forward_fused.1} parent=0 // pred_check
    _
  $region35: #{vae_forward_fused.1} parent=0 // pred_check_branch
    %41 = sbr.rel (0) target = $region37
  $region36: #{vae_forward_fused.1} parent=0 // pred_region
    _
  $region37: #{vae_forward_fused.1} parent=0 // pred_fallthru
    _
  // Predicated region
  $region38: #{vae_forward_fused.1} parent=0 // pred_check
    _
  $region39: #{vae_forward_fused.1} parent=0 // pred_check_branch
    %43 = sbr.rel (0) target = $region41
  $region40: #{vae_forward_fused.1} parent=0 // pred_region
    _
  $region41: #{vae_forward_fused.1} parent=0 // pred_fallthru
    _
  // Predicated region
  $region42: #{vae_forward_fused.1} parent=0 // pred_check
    _
  $region43: #{vae_forward_fused.1} parent=0 // pred_check_branch
    %45 = sbr.rel (0) target = $region45
  $region44: #{vae_forward_fused.1} parent=0 // pred_region
    _
  $region45: #{vae_forward_fused.1} parent=0 // pred_fallthru
    _
  // Predicated region
  $region46: #{vae_forward_fused.1} parent=0 // pred_check
    _
  $region47: #{vae_forward_fused.1} parent=0 // pred_check_branch
    %47 = sbr.rel (0) target = $region49
  $region48: #{vae_forward_fused.1} parent=0 // pred_region
    _
  $region49: #{vae_forward_fused.1} parent=0 // pred_fallthru
    _
  // Predicated region
  $region50: #{vae_forward_fused.1} parent=0 // pred_check
    _
  $region51: #{vae_forward_fused.1} parent=0 // pred_check_branch
    %49 = sbr.rel (0) target = $region53
  $region52: #{vae_forward_fused.1} parent=0 // pred_region
    _
  $region53: #{vae_forward_fused.1} parent=0 // pred_fallthru
    _
  // Predicated region
  $region54: #{vae_forward_fused.1} parent=0 // pred_check
    _
  $region55: #{vae_forward_fused.1} parent=0 // pred_check_branch
    %51 = sbr.rel (0) target = $region57
  $region56: #{vae_forward_fused.1} parent=0 // pred_region
    _
  $region57: #{vae_forward_fused.1} parent=0 // pred_fallthru
    _
  // Predicated region
  $region58: #{vae_forward_fused.1} parent=0 // pred_check
    _
  $region59: #{vae_forward_fused.1} parent=0 // pred_check_branch
    %53 = sbr.rel (0) target = $region61
  $region60: #{vae_forward_fused.1} parent=0 // pred_region
    _
  $region61: #{vae_forward_fused.1} parent=0 // pred_fallthru
    _
  // Predicated region
  $region62: #{vae_forward_fused.1} parent=0 // pred_check
    _
  $region63: #{vae_forward_fused.1} parent=0 // pred_check_branch
    %55 = sbr.rel (0) target = $region65
  $region64: #{vae_forward_fused.1} parent=0 // pred_region
    _
  $region65: #{vae_forward_fused.1} parent=0 // pred_fallthru
    _
  %v57 = vld [vmem:[%s0] sm:$0xff]
  %v58 = vpack.c.bf16 %v57, %v57
  %v59 = vld [vmem:[%s2] sm:$0xf]
  %v60 = vld [vmem:[%s2 + $0x4] sm:$0xf]
  %v61 = vld [vmem:[%s2 + $0x8] sm:$0xf]
  %v62 = vld [vmem:[%s2 + $0xc] sm:$0xf]
  %v63 = vld [vmem:[%s2 + $0x10] sm:$0xf]
  %v64 = vld [vmem:[%s2 + $0x14] sm:$0xf]
  %v65 = vld [vmem:[%s2 + $0x18] sm:$0xf]
  %v66 = vld [vmem:[%s2 + $0x1c] sm:$0xf]
  %v67 = vld [vmem:[%s3] sm:$0x1]
  %v69 = vlaneseq
  %v70 = vshrl.u32 %v69, 7
  %v71 = vsub.s32 0, %v70
  %v72 = vrot.slane %v67, %v71
  %v82 = vunpack.c.l.b16 %v59
  %v83 = vunpack.c.l.b16 %v60
  %v84 = vunpack.c.l.b16 %v61
  %v85 = vunpack.c.l.b16 %v62
  %v86 = vunpack.c.l.b16 %v63
  %v87 = vunpack.c.l.b16 %v64
  %v88 = vunpack.c.l.b16 %v65
  %v89 = vunpack.c.l.b16 %v66
  %v90 = vpack.c.b16 %v83, %v82
  %v91 = vpack.c.b16 %v85, %v84
  %v92 = vpack.c.b16 %v87, %v86
  %v93 = vpack.c.b16 %v89, %v88
  %vm98 = vcmask 523264
  %v100 = vsel %vm98, %v58, 0
  %102 = vmatprep.subr.bf16.mxu0 0
  %103 = vmatpush1.bf16.msra.mxu0 0
  %104 = vmatprep.subr.bf16.mxu0 0
  %105 = vmatpush1.bf16.msra.mxu0 0
  %106 = vmatprep.subr.bf16.mxu0 0
  %107 = vmatpush1.bf16.msra.mxu0 0
  %108 = vmatprep.subr.bf16.mxu0 0
  %109 = vmatpush1.bf16.msra.mxu0 0
  %110 = vmatprep.subr.bf16.mxu0 0
  %111 = vmatpush1.bf16.msra.mxu0 %v93
  %112 = vmatprep.subr.bf16.mxu0 0
  %113 = vmatpush1.bf16.msra.mxu0 %v92
  %114 = vmatprep.subr.bf16.mxu0 0
  %115 = vmatpush1.bf16.msra.mxu0 %v91
  %116 = vmatprep.subr.bf16.mxu0 0
  %117 = vmatpush1.bf16.msra.mxu0 %v90
  %118 = vmatprep.subr.bf16.mxu0 0
  %119 = vmatpush2.bf16.msra.mxu0 0
  %120 = vmatprep.subr.bf16.mxu0 0
  %121 = vmatpush2.bf16.msra.mxu0 0
  %122 = vmatprep.subr.bf16.mxu0 0
  %123 = vmatpush2.bf16.msra.mxu0 0
  %124 = vmatprep.subr.bf16.mxu0 0
  %125 = vmatpush2.bf16.msra.mxu0 0
  %126 = vmatprep.subr.bf16.mxu0 0
  %127 = vmatpush2.bf16.msra.mxu0 0
  %128 = vmatprep.subr.bf16.mxu0 0
  %129 = vmatpush2.bf16.msra.mxu0 0
  %130 = vmatprep.subr.bf16.mxu0 0
  %131 = vmatpush2.bf16.msra.mxu0 0
  %132 = vmatprep.subr.bf16.mxu0 0
  %133 = vmatpush2.bf16.msra.mxu0 0
  %134 = vmatprep.mubr.bf16.mxu0 0
  %135 = vmatmul.mubr.bf16.gmra.mxu0 %v100
  %v136 = vpop.f32.mrf.mxu0
  %v137 = vadd.f32 %v72, %v136
  %v138 = vpop.f32.mrf.mxu0
  %v139 = vpop.f32.mrf.mxu0
  %v140 = vpop.f32.mrf.mxu0
  %141 = vdwg.mxu0
  %v142 = vmax.f32 %v137, 0.0
  %v143 = vpack.c.bf16 %v142, %v142
  %v144 = vld [vmem:[%s4] sm:$0xf]
  %v145 = vld [vmem:[%s4 + $0x4] sm:$0xf]
  %v146 = vld [vmem:[%s4 + $0x8] sm:$0xf]
  %v147 = vld [vmem:[%s4 + $0xc] sm:$0xf]
  %v148 = vld [vmem:[%s4 + $0x10] sm:$0xf]
  %v149 = vld [vmem:[%s4 + $0x14] sm:$0xf]
  %v150 = vld [vmem:[%s4 + $0x18] sm:$0xf]
  %v151 = vld [vmem:[%s4 + $0x1c] sm:$0xf]
  %v152 = vld [vmem:[%s4 + $0x20] sm:$0xf]
  %v153 = vld [vmem:[%s4 + $0x24] sm:$0xf]
  %v154 = vld [vmem:[%s4 + $0x28] sm:$0xf]
  %v155 = vld [vmem:[%s4 + $0x2c] sm:$0xf]
  %v156 = vld [vmem:[%s4 + $0x30] sm:$0xf]
  %v157 = vld [vmem:[%s4 + $0x34] sm:$0xf]
  %v158 = vld [vmem:[%s4 + $0x38] sm:$0xf]
  %v159 = vld [vmem:[%s4 + $0x3c] sm:$0xf]
  %v160 = vld [vmem:[%s5] sm:$0x1]
  %v162 = vlaneseq
  %v163 = vshrl.u32 %v162, 7
  %v164 = vsub.s32 0, %v163
  %v165 = vrot.slane %v160, %v164
  %v183 = vunpack.c.l.b16 %v144
  %v184 = vunpack.c.l.b16 %v145
  %v185 = vunpack.c.l.b16 %v146
  %v186 = vunpack.c.l.b16 %v147
  %v187 = vunpack.c.l.b16 %v148
  %v188 = vunpack.c.l.b16 %v149
  %v189 = vunpack.c.l.b16 %v150
  %v190 = vunpack.c.l.b16 %v151
  %v191 = vunpack.c.l.b16 %v152
  %v192 = vunpack.c.l.b16 %v153
  %v193 = vunpack.c.l.b16 %v154
  %v194 = vunpack.c.l.b16 %v155
  %v195 = vunpack.c.l.b16 %v156
  %v196 = vunpack.c.l.b16 %v157
  %v197 = vunpack.c.l.b16 %v158
  %v198 = vunpack.c.l.b16 %v159
  %v199 = vpack.c.b16 %v184, %v183
  %v200 = vpack.c.b16 %v186, %v185
  %v201 = vpack.c.b16 %v188, %v187
  %v202 = vpack.c.b16 %v190, %v189
  %v203 = vpack.c.b16 %v192, %v191
  %v204 = vpack.c.b16 %v194, %v193
  %v205 = vpack.c.b16 %v196, %v195
  %v206 = vpack.c.b16 %v198, %v197
  %215 = vmatprep.subr.bf16.mxu0 0
  %216 = vmatpush1.bf16.msra.mxu0 %v206
  %217 = vmatprep.subr.bf16.mxu0 0
  %218 = vmatpush1.bf16.msra.mxu0 %v205
  %219 = vmatprep.subr.bf16.mxu0 0
  %220 = vmatpush1.bf16.msra.mxu0 %v204
  %221 = vmatprep.subr.bf16.mxu0 0
  %222 = vmatpush1.bf16.msra.mxu0 %v203
  %223 = vmatprep.subr.bf16.mxu0 0
  %224 = vmatpush1.bf16.msra.mxu0 %v202
  %225 = vmatprep.subr.bf16.mxu0 0
  %226 = vmatpush1.bf16.msra.mxu0 %v201
  %227 = vmatprep.subr.bf16.mxu0 0
  %228 = vmatpush1.bf16.msra.mxu0 %v200
  %229 = vmatprep.subr.bf16.mxu0 0
  %230 = vmatpush1.bf16.msra.mxu0 %v199
  %231 = vmatprep.subr.bf16.mxu0 0
  %232 = vmatpush2.bf16.msra.mxu0 0
  %233 = vmatprep.subr.bf16.mxu0 0
  %234 = vmatpush2.bf16.msra.mxu0 0
  %235 = vmatprep.subr.bf16.mxu0 0
  %236 = vmatpush2.bf16.msra.mxu0 0
  %237 = vmatprep.subr.bf16.mxu0 0
  %238 = vmatpush2.bf16.msra.mxu0 0
  %239 = vmatprep.subr.bf16.mxu0 0
  %240 = vmatpush2.bf16.msra.mxu0 0
  %241 = vmatprep.subr.bf16.mxu0 0
  %242 = vmatpush2.bf16.msra.mxu0 0
  %243 = vmatprep.subr.bf16.mxu0 0
  %244 = vmatpush2.bf16.msra.mxu0 0
  %245 = vmatprep.subr.bf16.mxu0 0
  %246 = vmatpush2.bf16.msra.mxu0 0
  %247 = vmatprep.mubr.bf16.mxu0 0
  %248 = vmatmul.mubr.bf16.gmra.mxu0 %v143
  %v249 = vpop.f32.mrf.mxu0
  %v250 = vadd.f32 %v165, %v249
  %v251 = vpop.f32.mrf.mxu0
  %v252 = vpop.f32.mrf.mxu0
  %v253 = vpop.f32.mrf.mxu0
  %254 = vdwg.mxu0
  %v255 = vmax.f32 %v250, 0.0
  %v256 = vpack.c.bf16 %v255, %v255
  %v257 = vld [vmem:[%s6] sm:$0xf]
  %v258 = vld [vmem:[%s6 + $0x4] sm:$0xf]
  %v259 = vld [vmem:[%s6 + $0x8] sm:$0xf]
  %v260 = vld [vmem:[%s6 + $0xc] sm:$0xf]
  %v261 = vld [vmem:[%s6 + $0x10] sm:$0xf]
  %v262 = vld [vmem:[%s6 + $0x14] sm:$0xf]
  %v263 = vld [vmem:[%s6 + $0x18] sm:$0xf]
  %v264 = vld [vmem:[%s6 + $0x1c] sm:$0xf]
  %v265 = vld [vmem:[%s6 + $0x20] sm:$0xf]
  %v266 = vld [vmem:[%s6 + $0x24] sm:$0xf]
  %v267 = vld [vmem:[%s6 + $0x28] sm:$0xf]
  %v268 = vld [vmem:[%s6 + $0x2c] sm:$0xf]
  %v269 = vld [vmem:[%s6 + $0x30] sm:$0xf]
  %v270 = vld [vmem:[%s6 + $0x34] sm:$0xf]
  %v271 = vld [vmem:[%s6 + $0x38] sm:$0xf]
  %v272 = vld [vmem:[%s6 + $0x3c] sm:$0xf]
  %v273 = vld [vmem:[%s7] sm:$0x1]
  %v275 = vlaneseq
  %v276 = vshrl.u32 %v275, 7
  %v277 = vsub.s32 0, %v276
  %v278 = vrot.slane %v273, %v277
  %v296 = vunpack.c.l.b16 %v257
  %v297 = vunpack.c.l.b16 %v258
  %v298 = vunpack.c.l.b16 %v259
  %v299 = vunpack.c.l.b16 %v260
  %v300 = vunpack.c.l.b16 %v261
  %v301 = vunpack.c.l.b16 %v262
  %v302 = vunpack.c.l.b16 %v263
  %v303 = vunpack.c.l.b16 %v264
  %v304 = vunpack.c.l.b16 %v265
  %v305 = vunpack.c.l.b16 %v266
  %v306 = vunpack.c.l.b16 %v267
  %v307 = vunpack.c.l.b16 %v268
  %v308 = vunpack.c.l.b16 %v269
  %v309 = vunpack.c.l.b16 %v270
  %v310 = vunpack.c.l.b16 %v271
  %v311 = vunpack.c.l.b16 %v272
  %v312 = vpack.c.b16 %v297, %v296
  %v313 = vpack.c.b16 %v299, %v298
  %v314 = vpack.c.b16 %v301, %v300
  %v315 = vpack.c.b16 %v303, %v302
  %v316 = vpack.c.b16 %v305, %v304
  %v317 = vpack.c.b16 %v307, %v306
  %v318 = vpack.c.b16 %v309, %v308
  %v319 = vpack.c.b16 %v311, %v310
  %328 = vmatprep.subr.bf16.mxu0 0
  %329 = vmatpush1.bf16.msra.mxu0 %v319
  %330 = vmatprep.subr.bf16.mxu0 0
  %331 = vmatpush1.bf16.msra.mxu0 %v318
  %332 = vmatprep.subr.bf16.mxu0 0
  %333 = vmatpush1.bf16.msra.mxu0 %v317
  %334 = vmatprep.subr.bf16.mxu0 0
  %335 = vmatpush1.bf16.msra.mxu0 %v316
  %336 = vmatprep.subr.bf16.mxu0 0
  %337 = vmatpush1.bf16.msra.mxu0 %v315
  %338 = vmatprep.subr.bf16.mxu0 0
  %339 = vmatpush1.bf16.msra.mxu0 %v314
  %340 = vmatprep.subr.bf16.mxu0 0
  %341 = vmatpush1.bf16.msra.mxu0 %v313
  %342 = vmatprep.subr.bf16.mxu0 0
  %343 = vmatpush1.bf16.msra.mxu0 %v312
  %344 = vmatprep.subr.bf16.mxu0 0
  %345 = vmatpush2.bf16.msra.mxu0 0
  %346 = vmatprep.subr.bf16.mxu0 0
  %347 = vmatpush2.bf16.msra.mxu0 0
  %348 = vmatprep.subr.bf16.mxu0 0
  %349 = vmatpush2.bf16.msra.mxu0 0
  %350 = vmatprep.subr.bf16.mxu0 0
  %351 = vmatpush2.bf16.msra.mxu0 0
  %352 = vmatprep.subr.bf16.mxu0 0
  %353 = vmatpush2.bf16.msra.mxu0 0
  %354 = vmatprep.subr.bf16.mxu0 0
  %355 = vmatpush2.bf16.msra.mxu0 0
  %356 = vmatprep.subr.bf16.mxu0 0
  %357 = vmatpush2.bf16.msra.mxu0 0
  %358 = vmatprep.subr.bf16.mxu0 0
  %359 = vmatpush2.bf16.msra.mxu0 0
  %360 = vmatprep.mubr.bf16.mxu0 0
  %361 = vmatmul.mubr.bf16.gmra.mxu0 %v256
  %v362 = vpop.f32.mrf.mxu0
  %v363 = vadd.f32 %v278, %v362
  %v364 = vpop.f32.mrf.mxu0
  %v365 = vpop.f32.mrf.mxu0
  %v366 = vpop.f32.mrf.mxu0
  %367 = vdwg.mxu0
  %v368 = vld [vmem:[%s8] sm:$0xf]
  %v369 = vld [vmem:[%s8 + $0x4] sm:$0xf]
  %v370 = vld [vmem:[%s8 + $0x8] sm:$0xf]
  %v371 = vld [vmem:[%s8 + $0xc] sm:$0xf]
  %v372 = vld [vmem:[%s8 + $0x10] sm:$0xf]
  %v373 = vld [vmem:[%s8 + $0x14] sm:$0xf]
  %v374 = vld [vmem:[%s8 + $0x18] sm:$0xf]
  %v375 = vld [vmem:[%s8 + $0x1c] sm:$0xf]
  %v376 = vld [vmem:[%s8 + $0x20] sm:$0xf]
  %v377 = vld [vmem:[%s8 + $0x24] sm:$0xf]
  %v378 = vld [vmem:[%s8 + $0x28] sm:$0xf]
  %v379 = vld [vmem:[%s8 + $0x2c] sm:$0xf]
  %v380 = vld [vmem:[%s8 + $0x30] sm:$0xf]
  %v381 = vld [vmem:[%s8 + $0x34] sm:$0xf]
  %v382 = vld [vmem:[%s8 + $0x38] sm:$0xf]
  %v383 = vld [vmem:[%s8 + $0x3c] sm:$0xf]
  %v384 = vld [vmem:[%s9] sm:$0x1]
  %v386 = vlaneseq
  %v387 = vshrl.u32 %v386, 7
  %v388 = vsub.s32 0, %v387
  %v389 = vrot.slane %v384, %v388
  %v407 = vunpack.c.l.b16 %v368
  %v408 = vunpack.c.l.b16 %v369
  %v409 = vunpack.c.l.b16 %v370
  %v410 = vunpack.c.l.b16 %v371
  %v411 = vunpack.c.l.b16 %v372
  %v412 = vunpack.c.l.b16 %v373
  %v413 = vunpack.c.l.b16 %v374
  %v414 = vunpack.c.l.b16 %v375
  %v415 = vunpack.c.l.b16 %v376
  %v416 = vunpack.c.l.b16 %v377
  %v417 = vunpack.c.l.b16 %v378
  %v418 = vunpack.c.l.b16 %v379
  %v419 = vunpack.c.l.b16 %v380
  %v420 = vunpack.c.l.b16 %v381
  %v421 = vunpack.c.l.b16 %v382
  %v422 = vunpack.c.l.b16 %v383
  %v423 = vpack.c.b16 %v408, %v407
  %v424 = vpack.c.b16 %v410, %v409
  %v425 = vpack.c.b16 %v412, %v411
  %v426 = vpack.c.b16 %v414, %v413
  %v427 = vpack.c.b16 %v416, %v415
  %v428 = vpack.c.b16 %v418, %v417
  %v429 = vpack.c.b16 %v420, %v419
  %v430 = vpack.c.b16 %v422, %v421
  %439 = vmatprep.subr.bf16.mxu0 0
  %440 = vmatpush1.bf16.msra.mxu0 %v430
  %441 = vmatprep.subr.bf16.mxu0 0
  %442 = vmatpush1.bf16.msra.mxu0 %v429
  %443 = vmatprep.subr.bf16.mxu0 0
  %444 = vmatpush1.bf16.msra.mxu0 %v428
  %445 = vmatprep.subr.bf16.mxu0 0
  %446 = vmatpush1.bf16.msra.mxu0 %v427
  %447 = vmatprep.subr.bf16.mxu0 0
  %448 = vmatpush1.bf16.msra.mxu0 %v426
  %449 = vmatprep.subr.bf16.mxu0 0
  %450 = vmatpush1.bf16.msra.mxu0 %v425
  %451 = vmatprep.subr.bf16.mxu0 0
  %452 = vmatpush1.bf16.msra.mxu0 %v424
  %453 = vmatprep.subr.bf16.mxu0 0
  %454 = vmatpush1.bf16.msra.mxu0 %v423
  %455 = vmatprep.subr.bf16.mxu0 0
  %456 = vmatpush2.bf16.msra.mxu0 0
  %457 = vmatprep.subr.bf16.mxu0 0
  %458 = vmatpush2.bf16.msra.mxu0 0
  %459 = vmatprep.subr.bf16.mxu0 0
  %460 = vmatpush2.bf16.msra.mxu0 0
  %461 = vmatprep.subr.bf16.mxu0 0
  %462 = vmatpush2.bf16.msra.mxu0 0
  %463 = vmatprep.subr.bf16.mxu0 0
  %464 = vmatpush2.bf16.msra.mxu0 0
  %465 = vmatprep.subr.bf16.mxu0 0
  %466 = vmatpush2.bf16.msra.mxu0 0
  %467 = vmatprep.subr.bf16.mxu0 0
  %468 = vmatpush2.bf16.msra.mxu0 0
  %469 = vmatprep.subr.bf16.mxu0 0
  %470 = vmatpush2.bf16.msra.mxu0 0
  %471 = vmatprep.mubr.bf16.mxu0 0
  %472 = vmatmul.mubr.bf16.gmra.mxu0 %v256
  %v473 = vpop.f32.mrf.mxu0
  %v474 = vadd.f32 %v389, %v473
  %v475 = vpop.f32.mrf.mxu0
  %v476 = vpop.f32.mrf.mxu0
  %v477 = vpop.f32.mrf.mxu0
  %478 = vdwg.mxu0
  %v479 = vld [vmem:[%s1] sm:$0xff]
  %v480 = vmul.f32 %v474, 0.5
  %v481 = vmul.f32 %v480, 1.442695
  %v482 = vpow.pop %v481
  %v483 = vmul.f32 %v479, %v482
  %v484 = vadd.f32 %v483, %v363
  %v485 = vpack.c.bf16 %v484, %v484
  %v486 = vld [vmem:[%s10] sm:$0xf]
  %v487 = vld [vmem:[%s10 + $0x4] sm:$0xf]
  %v488 = vld [vmem:[%s11] sm:$0x1]
  %v490 = vlaneseq
  %v491 = vshrl.u32 %v490, 7
  %v492 = vsub.s32 0, %v491
  %v493 = vrot.slane %v488, %v492
  %v497 = vunpack.c.l.b16 %v486
  %v498 = vunpack.c.l.b16 %v487
  %v499 = vpack.c.b16 %v498, %v497
  %vm501 = vcmask 130048
  %v503 = vsel %vm501, %v485, 0
  %505 = vmatprep.subr.bf16.mxu0 0
  %506 = vmatpush1.bf16.msra.mxu0 0
  %507 = vmatprep.subr.bf16.mxu0 0
  %508 = vmatpush1.bf16.msra.mxu0 0
  %509 = vmatprep.subr.bf16.mxu0 0
  %510 = vmatpush1.bf16.msra.mxu0 0
  %511 = vmatprep.subr.bf16.mxu0 0
  %512 = vmatpush1.bf16.msra.mxu0 0
  %513 = vmatprep.subr.bf16.mxu0 0
  %514 = vmatpush1.bf16.msra.mxu0 0
  %515 = vmatprep.subr.bf16.mxu0 0
  %516 = vmatpush1.bf16.msra.mxu0 0
  %517 = vmatprep.subr.bf16.mxu0 0
  %518 = vmatpush1.bf16.msra.mxu0 0
  %519 = vmatprep.subr.bf16.mxu0 0
  %520 = vmatpush1.bf16.msra.mxu0 %v499
  %521 = vmatprep.subr.bf16.mxu0 0
  %522 = vmatpush2.bf16.msra.mxu0 0
  %523 = vmatprep.subr.bf16.mxu0 0
  %524 = vmatpush2.bf16.msra.mxu0 0
  %525 = vmatprep.subr.bf16.mxu0 0
  %526 = vmatpush2.bf16.msra.mxu0 0
  %527 = vmatprep.subr.bf16.mxu0 0
  %528 = vmatpush2.bf16.msra.mxu0 0
  %529 = vmatprep.subr.bf16.mxu0 0
  %530 = vmatpush2.bf16.msra.mxu0 0
  %531 = vmatprep.subr.bf16.mxu0 0
  %532 = vmatpush2.bf16.msra.mxu0 0
  %533 = vmatprep.subr.bf16.mxu0 0
  %534 = vmatpush2.bf16.msra.mxu0 0
  %535 = vmatprep.subr.bf16.mxu0 0
  %536 = vmatpush2.bf16.msra.mxu0 0
  %537 = vmatprep.mubr.bf16.mxu0 0
  %538 = vmatmul.mubr.bf16.gmra.mxu0 %v503
  %v539 = vpop.f32.mrf.mxu0
  %v540 = vadd.f32 %v493, %v539
  %v541 = vpop.f32.mrf.mxu0
  %v542 = vpop.f32.mrf.mxu0
  %v543 = vpop.f32.mrf.mxu0
  %544 = vdwg.mxu0
  %v545 = vmax.f32 %v540, 0.0
  %v546 = vpack.c.bf16 %v545, %v545
  %v547 = vld [vmem:[%s12] sm:$0xf]
  %v548 = vld [vmem:[%s12 + $0x4] sm:$0xf]
  %v549 = vld [vmem:[%s12 + $0x8] sm:$0xf]
  %v550 = vld [vmem:[%s12 + $0xc] sm:$0xf]
  %v551 = vld [vmem:[%s12 + $0x10] sm:$0xf]
  %v552 = vld [vmem:[%s12 + $0x14] sm:$0xf]
  %v553 = vld [vmem:[%s12 + $0x18] sm:$0xf]
  %v554 = vld [vmem:[%s12 + $0x1c] sm:$0xf]
  %v555 = vld [vmem:[%s12 + $0x20] sm:$0xf]
  %v556 = vld [vmem:[%s12 + $0x24] sm:$0xf]
  %v557 = vld [vmem:[%s12 + $0x28] sm:$0xf]
  %v558 = vld [vmem:[%s12 + $0x2c] sm:$0xf]
  %v559 = vld [vmem:[%s12 + $0x30] sm:$0xf]
  %v560 = vld [vmem:[%s12 + $0x34] sm:$0xf]
  %v561 = vld [vmem:[%s12 + $0x38] sm:$0xf]
  %v562 = vld [vmem:[%s12 + $0x3c] sm:$0xf]
  %v563 = vld [vmem:[%s13] sm:$0x1]
  %v565 = vlaneseq
  %v566 = vshrl.u32 %v565, 7
  %v567 = vsub.s32 0, %v566
  %v568 = vrot.slane %v563, %v567
  %v586 = vunpack.c.l.b16 %v547
  %v587 = vunpack.c.l.b16 %v548
  %v588 = vunpack.c.l.b16 %v549
  %v589 = vunpack.c.l.b16 %v550
  %v590 = vunpack.c.l.b16 %v551
  %v591 = vunpack.c.l.b16 %v552
  %v592 = vunpack.c.l.b16 %v553
  %v593 = vunpack.c.l.b16 %v554
  %v594 = vunpack.c.l.b16 %v555
  %v595 = vunpack.c.l.b16 %v556
  %v596 = vunpack.c.l.b16 %v557
  %v597 = vunpack.c.l.b16 %v558
  %v598 = vunpack.c.l.b16 %v559
  %v599 = vunpack.c.l.b16 %v560
  %v600 = vunpack.c.l.b16 %v561
  %v601 = vunpack.c.l.b16 %v562
  %v602 = vpack.c.b16 %v587, %v586
  %v603 = vpack.c.b16 %v589, %v588
  %v604 = vpack.c.b16 %v591, %v590
  %v605 = vpack.c.b16 %v593, %v592
  %v606 = vpack.c.b16 %v595, %v594
  %v607 = vpack.c.b16 %v597, %v596
  %v608 = vpack.c.b16 %v599, %v598
  %v609 = vpack.c.b16 %v601, %v600
  %618 = vmatprep.subr.bf16.mxu0 0
  %619 = vmatpush1.bf16.msra.mxu0 %v609
  %620 = vmatprep.subr.bf16.mxu0 0
  %621 = vmatpush1.bf16.msra.mxu0 %v608
  %622 = vmatprep.subr.bf16.mxu0 0
  %623 = vmatpush1.bf16.msra.mxu0 %v607
  %624 = vmatprep.subr.bf16.mxu0 0
  %625 = vmatpush1.bf16.msra.mxu0 %v606
  %626 = vmatprep.subr.bf16.mxu0 0
  %627 = vmatpush1.bf16.msra.mxu0 %v605
  %628 = vmatprep.subr.bf16.mxu0 0
  %629 = vmatpush1.bf16.msra.mxu0 %v604
  %630 = vmatprep.subr.bf16.mxu0 0
  %631 = vmatpush1.bf16.msra.mxu0 %v603
  %632 = vmatprep.subr.bf16.mxu0 0
  %633 = vmatpush1.bf16.msra.mxu0 %v602
  %634 = vmatprep.subr.bf16.mxu0 0
  %635 = vmatpush2.bf16.msra.mxu0 0
  %636 = vmatprep.subr.bf16.mxu0 0
  %637 = vmatpush2.bf16.msra.mxu0 0
  %638 = vmatprep.subr.bf16.mxu0 0
  %639 = vmatpush2.bf16.msra.mxu0 0
  %640 = vmatprep.subr.bf16.mxu0 0
  %641 = vmatpush2.bf16.msra.mxu0 0
  %642 = vmatprep.subr.bf16.mxu0 0
  %643 = vmatpush2.bf16.msra.mxu0 0
  %644 = vmatprep.subr.bf16.mxu0 0
  %645 = vmatpush2.bf16.msra.mxu0 0
  %646 = vmatprep.subr.bf16.mxu0 0
  %647 = vmatpush2.bf16.msra.mxu0 0
  %648 = vmatprep.subr.bf16.mxu0 0
  %649 = vmatpush2.bf16.msra.mxu0 0
  %650 = vmatprep.mubr.bf16.mxu0 0
  %651 = vmatmul.mubr.bf16.gmra.mxu0 %v546
  %v652 = vpop.f32.mrf.mxu0
  %v653 = vadd.f32 %v568, %v652
  %v654 = vpop.f32.mrf.mxu0
  %v655 = vpop.f32.mrf.mxu0
  %v656 = vpop.f32.mrf.mxu0
  %657 = vdwg.mxu0
  %v658 = vmax.f32 %v653, 0.0
  %v659 = vpack.c.bf16 %v658, %v658
  %v660 = vld [vmem:[%s14] sm:$0xf]
  %v661 = vld [vmem:[%s14 + $0x4] sm:$0xf]
  %v662 = vld [vmem:[%s14 + $0x8] sm:$0xf]
  %v663 = vld [vmem:[%s14 + $0xc] sm:$0xf]
  %v664 = vld [vmem:[%s14 + $0x10] sm:$0xf]
  %v665 = vld [vmem:[%s14 + $0x14] sm:$0xf]
  %v666 = vld [vmem:[%s14 + $0x18] sm:$0xf]
  %v667 = vld [vmem:[%s14 + $0x1c] sm:$0xf]
  %v668 = vld [vmem:[%s14 + $0x20] sm:$0xf]
  %v669 = vld [vmem:[%s14 + $0x24] sm:$0xf]
  %v670 = vld [vmem:[%s14 + $0x28] sm:$0xf]
  %v671 = vld [vmem:[%s14 + $0x2c] sm:$0xf]
  %v672 = vld [vmem:[%s14 + $0x30] sm:$0xf]
  %v673 = vld [vmem:[%s14 + $0x34] sm:$0xf]
  %v674 = vld [vmem:[%s14 + $0x38] sm:$0xf]
  %v675 = vld [vmem:[%s14 + $0x3c] sm:$0xf]
  %v676 = vld [vmem:[%s15] sm:$0x1]
  %v678 = vlaneseq
  %v679 = vshrl.u32 %v678, 7
  %v680 = vsub.s32 0, %v679
  %v681 = vrot.slane %v676, %v680
  %v699 = vunpack.c.l.b16 %v660
  %v700 = vunpack.c.l.b16 %v661
  %v701 = vunpack.c.l.b16 %v662
  %v702 = vunpack.c.l.b16 %v663
  %v703 = vunpack.c.l.b16 %v664
  %v704 = vunpack.c.l.b16 %v665
  %v705 = vunpack.c.l.b16 %v666
  %v706 = vunpack.c.l.b16 %v667
  %v707 = vunpack.c.l.b16 %v668
  %v708 = vunpack.c.l.b16 %v669
  %v709 = vunpack.c.l.b16 %v670
  %v710 = vunpack.c.l.b16 %v671
  %v711 = vunpack.c.l.b16 %v672
  %v712 = vunpack.c.l.b16 %v673
  %v713 = vunpack.c.l.b16 %v674
  %v714 = vunpack.c.l.b16 %v675
  %v715 = vpack.c.b16 %v700, %v699
  %v716 = vpack.c.b16 %v702, %v701
  %v717 = vpack.c.b16 %v704, %v703
  %v718 = vpack.c.b16 %v706, %v705
  %v719 = vpack.c.b16 %v708, %v707
  %v720 = vpack.c.b16 %v710, %v709
  %v721 = vpack.c.b16 %v712, %v711
  %v722 = vpack.c.b16 %v714, %v713
  %731 = vmatprep.subr.bf16.mxu0 0
  %732 = vmatpush1.bf16.msra.mxu0 %v722
  %733 = vmatprep.subr.bf16.mxu0 0
  %734 = vmatpush1.bf16.msra.mxu0 %v721
  %735 = vmatprep.subr.bf16.mxu0 0
  %736 = vmatpush1.bf16.msra.mxu0 %v720
  %737 = vmatprep.subr.bf16.mxu0 0
  %738 = vmatpush1.bf16.msra.mxu0 %v719
  %739 = vmatprep.subr.bf16.mxu0 0
  %740 = vmatpush1.bf16.msra.mxu0 %v718
  %741 = vmatprep.subr.bf16.mxu0 0
  %742 = vmatpush1.bf16.msra.mxu0 %v717
  %743 = vmatprep.subr.bf16.mxu0 0
  %744 = vmatpush1.bf16.msra.mxu0 %v716
  %745 = vmatprep.subr.bf16.mxu0 0
  %746 = vmatpush1.bf16.msra.mxu0 %v715
  %747 = vmatprep.subr.bf16.mxu0 0
  %748 = vmatpush2.bf16.msra.mxu0 0
  %749 = vmatprep.subr.bf16.mxu0 0
  %750 = vmatpush2.bf16.msra.mxu0 0
  %751 = vmatprep.subr.bf16.mxu0 0
  %752 = vmatpush2.bf16.msra.mxu0 0
  %753 = vmatprep.subr.bf16.mxu0 0
  %754 = vmatpush2.bf16.msra.mxu0 0
  %755 = vmatprep.subr.bf16.mxu0 0
  %756 = vmatpush2.bf16.msra.mxu0 0
  %757 = vmatprep.subr.bf16.mxu0 0
  %758 = vmatpush2.bf16.msra.mxu0 0
  %759 = vmatprep.subr.bf16.mxu0 0
  %760 = vmatpush2.bf16.msra.mxu0 0
  %761 = vmatprep.subr.bf16.mxu0 0
  %762 = vmatpush2.bf16.msra.mxu0 0
  %763 = vmatprep.mubr.bf16.mxu0 0
  %764 = vmatmul.mubr.bf16.gmra.mxu0 %v659
  %v765 = vpop.f32.mrf.mxu0
  %v766 = vadd.f32 %v681, %v765
  %v767 = vpop.f32.mrf.mxu0
  %v768 = vpop.f32.mrf.mxu0
  %v769 = vpop.f32.mrf.mxu0
  %770 = vdwg.mxu0
  %v771 = vxor.u32 %v766, 2147483648
  %v772 = vmul.f32 %v771, 1.442695
  %v773 = vpow.pop %v772
  %v774 = vadd.f32 %v773, 1.0
  %v775 = vrcp.pop %v774
  %v776 = vmul.f32 1.0, %v775
  %777 = vst.msk [vmem:[%s16] sm:$0xff] %vm98, %v776
  %778 = vst.msk [vmem:[%s17] sm:$0xff] %vm501, %v363
  %779 = vst.msk [vmem:[%s18] sm:$0xff] %vm501, %v474
  // Predicated region
  $region66: #{vae_forward_fused.1} parent=0 // pred_check
    _
  $region67: #{vae_forward_fused.1} parent=0 // pred_check_branch
    %781 = sbr.rel (0) target = $region69
  $region68: #{vae_forward_fused.1} parent=0 // pred_region
    _
  $region69: #{vae_forward_fused.1} parent=0 // pred_fallthru
    _
  // Predicated region
  $region70: #{vae_forward_fused.1} parent=0 // pred_check
    _
  $region71: #{vae_forward_fused.1} parent=0 // pred_check_branch
    %783 = sbr.rel (0) target = $region73
  $region72: #{vae_forward_fused.1} parent=0 // pred_region
    _
  $region73: #{vae_forward_fused.1} parent=0 // pred_fallthru
    _
  // Predicated region
  $region74: #{vae_forward_fused.1} parent=0 // pred_check
    _
  $region75: #{vae_forward_fused.1} parent=0 // pred_check_branch
    %785 = sbr.rel (0) target = $region77
  $region76: #{vae_forward_fused.1} parent=0 // pred_region
    _
  $region77: #{vae_forward_fused.1} parent=0 // pred_fallthru
    _
  // Predicated region
  $region78: #{vae_forward_fused.1} parent=0 // pred_check
    _
  $region79: #{vae_forward_fused.1} parent=0 // pred_check_branch
    %787 = sbr.rel (0) target = $region81
  $region80: #{vae_forward_fused.1} parent=0 // pred_region
    _
  $region81: #{vae_forward_fused.1} parent=0 // pred_fallthru
    _
  // Predicated region
  $region82: #{vae_forward_fused.1} parent=0 // pred_check
    _
  $region83: #{vae_forward_fused.1} parent=0 // pred_check_branch
    %789 = sbr.rel (0) target = $region85
  $region84: #{vae_forward_fused.1} parent=0 // pred_region
    _
  $region85: #{vae_forward_fused.1} parent=0 // pred_fallthru
    _
  // Predicated region
  $region86: #{vae_forward_fused.1} parent=0 // pred_check
    _
  $region87: #{vae_forward_fused.1} parent=0 // pred_check_branch
    %791 = sbr.rel (0) target = $region89
  $region88: #{vae_forward_fused.1} parent=0 // pred_region
    _
  $region89: #{vae_forward_fused.1} parent=0 // pred_fallthru
    _

</llo_original>
